<compile_context>
chip_gen: v7x
topology: tpu7x:2x2x1
jax: 0.10.0
libtpu: 0.0.40
codegen_flags: <defaults>
</compile_context>

<pallas_src>
import math
from functools import partial

import jax
import jax.numpy as jnp
from jax import lax
from jax.experimental import pallas as pl
from jax.experimental.pallas import tpu as pltpu

_INV_SQRT2 = 1.0 / math.sqrt(2.0)


def _round_up(n, m):
    return ((n + m - 1) // m) * m


def mlp_kernel(x_ref, w1_ref, b1_ref, w2_ref, b2_ref, o_ref, acc_ref,
               *, approximate_gelu):
    """One (row-tile i, hidden-tile j) grid step of y = fc2(GELU(fc1(x))).

    The hidden dim is tiled along grid axis 1 ("arbitrary"); fc2 partial
    products accumulate into a VMEM f32 scratch; the biased result is written
    out on the last hidden tile.
    """
    j = pl.program_id(1)

    @pl.when(j == 0)
    def _():
        acc_ref[...] = jnp.zeros_like(acc_ref)

    # fc1 slice: (tm, tk) — bf16/f32 operands, f32 accumulation on the MXU.
    h = jnp.dot(x_ref[...], w1_ref[...], preferred_element_type=jnp.float32)
    h = h + b1_ref[...]

    if approximate_gelu:
        # Optional tanh-approx GELU (routes through the EUP); slightly deviates
        # from PyTorch's default erf GELU, so it is OFF by default.
        h = jax.nn.gelu(h, approximate=True)
    else:
        # Exact GELU (erf) — matches nn.GELU() default.
        h = 0.5 * h * (1.0 + lax.erf(h * _INV_SQRT2))

    # dropout p=0.0 -> identity (no-op).

    # fc2 partial product for this hidden tile, accumulated in f32.
    acc_ref[...] += jnp.dot(h.astype(w2_ref.dtype), w2_ref[...],
                            preferred_element_type=jnp.float32)

    @pl.when(j == pl.num_programs(1) - 1)
    def _():
        o_ref[...] = (acc_ref[...] + b2_ref[...]).astype(o_ref.dtype)


def mlp_pallas(x, w1, b1, w2, b2, *, tm=256, tk_hid=512,
               compute_dtype=jnp.bfloat16, approximate_gelu=False):
    """x: (B, N, C_in). w1: (C_in, C_hid), b1: (C_hid,), w2: (C_hid, C_out), b2: (C_out,)."""
    B, N, C_in = x.shape
    C_hid = w1.shape[1]
    C_out = w2.shape[1]
    M = B * N
    out_dtype = x.dtype
    cdt = jnp.dtype(compute_dtype)

    # --- lane-dense padding (multiples of 128 on channel dims) -------------
    C_in_p = _round_up(C_in, 128)
    C_hid_p = _round_up(C_hid, 128)
    C_out_p = _round_up(C_out, 128)

    tk = _round_up(min(tk_hid, C_hid_p), 128)   # hidden tile
    C_hid_p = _round_up(C_hid_p, tk)

    tm = max(8, _round_up(tm, 8))               # row tile
    M_p = _round_up(M, tm)                      # pad rows instead of asserting

    x2d = jnp.pad(x.reshape(M, C_in).astype(cdt),
                  ((0, M_p - M), (0, C_in_p - C_in)))
    w1p = jnp.pad(w1.astype(cdt), ((0, C_in_p - C_in), (0, C_hid_p - C_hid)))
    b1p = jnp.pad(b1.astype(jnp.float32), (0, C_hid_p - C_hid)).reshape(1, C_hid_p)
    w2p = jnp.pad(w2.astype(cdt), ((0, C_hid_p - C_hid), (0, C_out_p - C_out)))
    b2p = jnp.pad(b2.astype(jnp.float32), (0, C_out_p - C_out)).reshape(1, C_out_p)

    grid = (M_p // tm, C_hid_p // tk)

    # --- VMEM budget from the actual tile footprint (double-buffered I/O) ---
    csz = cdt.itemsize
    osz = jnp.dtype(out_dtype).itemsize
    est = (2 * (tm * C_in_p * csz            # x tile
                + C_in_p * tk * csz          # W1 tile
                + tk * C_out_p * csz         # W2 tile
                + 8 * tk * 4                 # b1 tile (sublane-padded)
                + 8 * C_out_p * 4            # b2 tile
                + tm * C_out_p * osz)        # out tile
           + tm * C_out_p * 4                # f32 accumulator scratch
           + tm * tk * 4)                    # f32 intermediate h
    vmem_limit = int(min(max(int(est * 1.5), 32 * 1024 * 1024),
                         64 * 1024 * 1024))  # cap for v7x (64 MiB / TC)

    cost = pl.CostEstimate(
        flops=2 * M * (C_in * C_hid + C_hid * C_out),
        transcendentals=M * C_hid,
        bytes_accessed=(M * C_in * csz + C_in * C_hid * csz
                        + C_hid * C_out * csz + C_hid * 4 + C_out * 4
                        + M * C_out * osz),
    )

    out2d = pl.pallas_call(
        partial(mlp_kernel, approximate_gelu=approximate_gelu),
        out_shape=jax.ShapeDtypeStruct((M_p, C_out_p), out_dtype),
        grid_spec=pltpu.PrefetchScalarGridSpec(
            num_scalar_prefetch=0,
            grid=grid,
            in_specs=[
                pl.BlockSpec((tm, C_in_p), lambda i, j: (i, 0)),    # x rows (const over j)
                pl.BlockSpec((C_in_p, tk), lambda i, j: (0, j)),    # W1 hidden slice
                pl.BlockSpec((1, tk), lambda i, j: (0, j)),         # b1 hidden slice
                pl.BlockSpec((tk, C_out_p), lambda i, j: (j, 0)),   # W2 hidden slice
                pl.BlockSpec((1, C_out_p), lambda i, j: (0, 0)),    # b2
            ],
            out_specs=pl.BlockSpec((tm, C_out_p), lambda i, j: (i, 0)),
            scratch_shapes=[pltpu.VMEM((tm, C_out_p), jnp.float32)],
        ),
        compiler_params=pltpu.CompilerParams(
            dimension_semantics=("parallel", "arbitrary"),
            vmem_limit_bytes=vmem_limit,
        ),
        cost_estimate=cost,
    )(x2d, w1p, b1p, w2p, b2p)

    return out2d[:M, :C_out].reshape(B, N, C_out)


def mlp_reference(x, w1, b1, w2, b2):
    """Pure-JAX reference mirroring the PyTorch forward (exact erf GELU)."""
    h = jnp.einsum("bnc,ch->bnh", x, w1) + b1
    h = 0.5 * h * (1.0 + lax.erf(h / math.sqrt(2.0)))
    y = jnp.einsum("bnh,ho->bno", h, w2) + b2
    return y


if __name__ == "__main__":
    # Small shapes consistent with the module: tokens (B, N, C), hidden expansion.
    B, N = 2, 8
    in_features, hidden_features, out_features = 32, 64, 32

    key = jax.random.PRNGKey(0)
    kx, k1, kb1, k2, kb2 = jax.random.split(key, 5)

    x = jax.random.normal(kx, (B, N, in_features), dtype=jnp.float32)

    # Deterministic "Linear" params (stored pre-transposed: (in, out)).
    bound1 = 1.0 / math.sqrt(in_features)
    w1 = jax.random.uniform(k1, (in_features, hidden_features),
                            minval=-bound1, maxval=bound1, dtype=jnp.float32)
    b1 = jax.random.uniform(kb1, (hidden_features,),
                            minval=-bound1, maxval=bound1, dtype=jnp.float32)

    bound2 = 1.0 / math.sqrt(hidden_features)
    w2 = jax.random.uniform(k2, (hidden_features, out_features),
                            minval=-bound2, maxval=bound2, dtype=jnp.float32)
    b2 = jax.random.uniform(kb2, (out_features,),
                            minval=-bound2, maxval=bound2, dtype=jnp.float32)

    ref = mlp_reference(x, w1, b1, w2, b2)

    # Exactness check: f32 operand path matches the reference tightly.
    out_f32 = jax.block_until_ready(
        mlp_pallas(x, w1, b1, w2, b2, compute_dtype=jnp.float32))
    assert out_f32.shape == (B, N, out_features)
    assert jnp.allclose(out_f32, ref, atol=1e-5, rtol=1e-5), "f32 mismatch vs reference"

    # Fast path: bf16 operands, f32 MXU accumulation (default) — relaxed tol.
    out_bf16 = jax.block_until_ready(mlp_pallas(x, w1, b1, w2, b2))
    assert out_bf16.shape == (B, N, out_features)
    assert jnp.allclose(out_bf16, ref, atol=5e-2, rtol=5e-2), "bf16 mismatch vs reference"

    print("KERNEL_OK")
</pallas_src>

<mosaic_0001>
module attributes {stable_mosaic.version = 11 : i64} {
  func.func @mlp_kernel(%arg0: i32, %arg1: i32, %arg2: memref<256x128xf32, #tpu.memory_space<vmem>>, %arg3: memref<128x128xf32, #tpu.memory_space<vmem>>, %arg4: memref<1x128xf32, #tpu.memory_space<vmem>>, %arg5: memref<128x128xf32, #tpu.memory_space<vmem>>, %arg6: memref<1x128xf32, #tpu.memory_space<vmem>>, %arg7: memref<256x128xf32, #tpu.memory_space<vmem>>, %arg8: memref<256x128xf32, #tpu.memory_space<vmem>>) attributes {dimension_semantics = [#tpu.dimension_semantics<parallel>, #tpu.dimension_semantics<arbitrary>], iteration_bounds = array<i64: 1, 1>, scalar_prefetch = 0 : i64, scratch_operands = 1 : i64, tpu.core_type = #tpu.core_type<tc>, window_params = [{transform_indices = @transform_0, window_bounds = array<i64: 256, 128>}, {transform_indices = @transform_1, window_bounds = array<i64: 128, 128>}, {transform_indices = @transform_2, window_bounds = array<i64: 1, 128>}, {transform_indices = @transform_3, window_bounds = array<i64: 128, 128>}, {pipeline_mode = #tpu.pipeline_mode<synchronous>, transform_indices = @transform_4, window_bounds = array<i64: 1, 128>}, {transform_indices = @transform_5, window_bounds = array<i64: 256, 128>}]} {
    %c0_i32 = arith.constant 0 : i32
    %0 = arith.cmpi eq, %arg1, %c0_i32 : i32
    %1 = arith.extui %0 : i1 to i32
    %c0_i32_0 = arith.constant 0 : i32
    %2 = arith.cmpi ne, %1, %c0_i32_0 : i32
    scf.if %2 {
      %cst_18 = arith.constant 0.000000e+00 : f32
      %25 = vector.broadcast %cst_18 : f32 to vector<256x128xf32>
      %c0_19 = arith.constant 0 : index
      %c0_20 = arith.constant 0 : index
      %26 = vector.load %arg8[%c0_19, %c0_20] : memref<256x128xf32, #tpu.memory_space<vmem>>, vector<256x128xf32>
      tpu.vector_store %arg8[%c0_19, %c0_20], %25 {strides = array<i32>} : memref<256x128xf32, #tpu.memory_space<vmem>>, vector<256x128xf32>,
    } else {
    }
    %c0 = arith.constant 0 : index
    %c0_1 = arith.constant 0 : index
    %3 = vector.load %arg2[%c0, %c0_1] : memref<256x128xf32, #tpu.memory_space<vmem>>, vector<256x128xf32>
    %c0_2 = arith.constant 0 : index
    %c0_3 = arith.constant 0 : index
    %4 = vector.load %arg3[%c0_2, %c0_3] : memref<128x128xf32, #tpu.memory_space<vmem>>, vector<128x128xf32>
    %cst = arith.constant dense<0.000000e+00> : vector<256x128xf32>
    %5 = tpu.matmul %3, %4, %cst {dimension_numbers = #tpu.dot_dimension_numbers<[1], [0], [0], [1], [0, 0, 1, 1], [], []>} : vector<256x128xf32>, vector<128x128xf32>, vector<256x128xf32> -> vector<256x128xf32>
    %c0_4 = arith.constant 0 : index
    %c0_5 = arith.constant 0 : index
    %6 = vector.load %arg4[%c0_4, %c0_5] : memref<1x128xf32, #tpu.memory_space<vmem>>, vector<1x128xf32>
    %7 = vector.broadcast %6 : vector<1x128xf32> to vector<256x128xf32>
    %8 = arith.addf %5, %7 : vector<256x128xf32>
    %cst_6 = arith.constant 5.000000e-01 : f32
    %9 = vector.broadcast %cst_6 : f32 to vector<256x128xf32>
    %10 = arith.mulf %9, %8 : vector<256x128xf32>
    %cst_7 = arith.constant 0.707106769 : f32
    %11 = vector.broadcast %cst_7 : f32 to vector<256x128xf32>
    %12 = arith.mulf %8, %11 : vector<256x128xf32>
    %13 = math.erf %12 : vector<256x128xf32>
    %cst_8 = arith.constant 1.000000e+00 : f32
    %14 = vector.broadcast %cst_8 : f32 to vector<256x128xf32>
    %15 = arith.addf %14, %13 : vector<256x128xf32>
    %16 = arith.mulf %10, %15 : vector<256x128xf32>
    %c0_9 = arith.constant 0 : index
    %c0_10 = arith.constant 0 : index
    %17 = vector.load %arg8[%c0_9, %c0_10] : memref<256x128xf32, #tpu.memory_space<vmem>>, vector<256x128xf32>
    %c0_11 = arith.constant 0 : index
    %c0_12 = arith.constant 0 : index
    %18 = vector.load %arg5[%c0_11, %c0_12] : memref<128x128xf32, #tpu.memory_space<vmem>>, vector<128x128xf32>
    %cst_13 = arith.constant dense<0.000000e+00> : vector<256x128xf32>
    %19 = tpu.matmul %16, %18, %cst_13 {dimension_numbers = #tpu.dot_dimension_numbers<[1], [0], [0], [1], [0, 0, 1, 1], [], []>} : vector<256x128xf32>, vector<128x128xf32>, vector<256x128xf32> -> vector<256x128xf32>
    %20 = arith.addf %17, %19 : vector<256x128xf32>
    %c0_14 = arith.constant 0 : index
    %c0_15 = arith.constant 0 : index
    %21 = vector.load %arg8[%c0_14, %c0_15] : memref<256x128xf32, #tpu.memory_space<vmem>>, vector<256x128xf32>
    tpu.vector_store %arg8[%c0_14, %c0_15], %20 {strides = array<i32>} : memref<256x128xf32, #tpu.memory_space<vmem>>, vector<256x128xf32>,
    %c0_i32_16 = arith.constant 0 : i32
    %22 = arith.cmpi eq, %arg1, %c0_i32_16 : i32
    %23 = arith.extui %22 : i1 to i32
    %c0_i32_17 = arith.constant 0 : i32
    %24 = arith.cmpi ne, %23, %c0_i32_17 : i32
    scf.if %24 {
      %c0_18 = arith.constant 0 : index
      %c0_19 = arith.constant 0 : index
      %25 = vector.load %arg8[%c0_18, %c0_19] : memref<256x128xf32, #tpu.memory_space<vmem>>, vector<256x128xf32>
      %c0_20 = arith.constant 0 : index
      %c0_21 = arith.constant 0 : index
      %26 = vector.load %arg6[%c0_20, %c0_21] : memref<1x128xf32, #tpu.memory_space<vmem>>, vector<1x128xf32>
      %27 = vector.broadcast %26 : vector<1x128xf32> to vector<256x128xf32>
      %28 = arith.addf %25, %27 : vector<256x128xf32>
      %c0_22 = arith.constant 0 : index
      %c0_23 = arith.constant 0 : index
      %29 = vector.load %arg7[%c0_22, %c0_23] : memref<256x128xf32, #tpu.memory_space<vmem>>, vector<256x128xf32>
      tpu.vector_store %arg7[%c0_22, %c0_23], %28 {strides = array<i32>} : memref<256x128xf32, #tpu.memory_space<vmem>>, vector<256x128xf32>,
    } else {
    }
    return
  }
  func.func @transform_0(%arg0: i32, %arg1: i32) -> (i32, i32) {
    %c0_i32 = arith.constant 0 : i32
    %c0_i32_0 = arith.constant 0 : i32
    return %arg0, %c0_i32 : i32, i32
  }
  func.func @transform_1(%arg0: i32, %arg1: i32) -> (i32, i32) {
    %c0_i32 = arith.constant 0 : i32
    %c0_i32_0 = arith.constant 0 : i32
    return %c0_i32, %arg1 : i32, i32
  }
  func.func @transform_2(%arg0: i32, %arg1: i32) -> (i32, i32) {
    %c0_i32 = arith.constant 0 : i32
    %c0_i32_0 = arith.constant 0 : i32
    return %c0_i32, %arg1 : i32, i32
  }
  func.func @transform_3(%arg0: i32, %arg1: i32) -> (i32, i32) {
    %c0_i32 = arith.constant 0 : i32
    %c0_i32_0 = arith.constant 0 : i32
    return %arg1, %c0_i32 : i32, i32
  }
  func.func @transform_4(%arg0: i32, %arg1: i32) -> (i32, i32) {
    %c0_i32 = arith.constant 0 : i32
    %c0_i32_0 = arith.constant 0 : i32
    %c0_i32_1 = arith.constant 0 : i32
    return %c0_i32, %c0_i32_0 : i32, i32
  }
  func.func @transform_5(%arg0: i32, %arg1: i32) -> (i32, i32) {
    %c0_i32 = arith.constant 0 : i32
    %c0_i32_0 = arith.constant 0 : i32
    return %arg0, %c0_i32 : i32, i32
  }
}

</mosaic_0001>

<llo_original>
// kernel: tpu_custom_call.1
$region0: #{tpu_custom_call.1}
  #allocation0 [shape = 'u32[]', space=smem, size = 0x4, offset = 0x4, fixed_abs, tag = 'smem constant byte address 0x4 - core index']
  #allocation1 [shape = 'u32[144,128]{1,0:T(1,128)}', space=vmem, size = 0x12000, scoped, tag = 'internal scratch']
  #allocation2 [shape = 'f32[256,128]{1,0:T(8,128)}', space=vmem, size = 0x20000, scoped, tag = 'scratch operand']
  %s0 = inlined_call_operand.hbm [shape: f32[256,128], index: 0, kind: input, shape index: {}]
  %s1 = inlined_call_operand.hbm [shape: f32[128,128], index: 1, kind: input, shape index: {}]
  %s2 = inlined_call_operand.vmem [shape: f32[1,128], index: 2, kind: input, shape index: {}]
  %s3 = inlined_call_operand.hbm [shape: f32[128,128], index: 3, kind: input, shape index: {}]
  %s4 = inlined_call_operand.vmem [shape: f32[1,128], index: 4, kind: input, shape index: {}]
  %s5 = inlined_call_operand.hbm [shape: f32[256,128], index: 5, kind: output, shape index: {}]
  %s6 = sld [smem:[#allocation0]]
  $region50: #{tpu_custom_call.1} parent=0
    _
  %s8 = ssub.s32 1, %s6
  %s9 = scalar_select 0, %s8, %s6
  $region1: #{tpu_custom_call.1} parent=0
    #allocation3 [shape = 'u8[131072]{0}', space=vmem, size = 0x20000, scoped, tag = 'input window, operand 0, single buffered']
    #allocation4 [shape = 's32[1]{0}', space=sflag, size = 0x4, scoped, tag = 'scoped memory for tpu_custom_call.1']
    #allocation5 [shape = 's32[1]{0}', space=sflag, size = 0x4, scoped, tag = 'scoped memory for tpu_custom_call.1']
    #allocation6 [shape = 'u8[65536]{0}', space=vmem, size = 0x10000, scoped, tag = 'input window, operand 1, single buffered']
    #allocation7 [shape = 's32[1]{0}', space=sflag, size = 0x4, scoped, tag = 'scoped memory for tpu_custom_call.1']
    #allocation8 [shape = 'u8[65536]{0}', space=vmem, size = 0x10000, scoped, tag = 'input window, operand 3, single buffered']
    #allocation9 [shape = 'u8[131072]{0}', space=vmem, size = 0x20000, scoped, tag = 'output window, operand 0, single buffered']
    %10 = vsyncpa [#allocation4], 0
    %11 = vsyncpa [#allocation7], 0
    %12 = vsyncpa [#allocation5], 0
    // Predicated region
    $region2: #{tpu_custom_call.1} parent=1 // pred_check
      _
    $region3: #{tpu_custom_call.1} parent=1 // pred_check_branch
      %14 = sbr.rel (0) target = $region5
    $region4: #{tpu_custom_call.1} parent=1 // pred_region
      %s16 = ssub.s32 4096, 4096
      %17 = vsyncadd [#allocation4], %s16
      %s18 = sshll.u32 [#allocation3], 4
      %s19 = int_to_ptr.vmem [resolvable:$true] %s18
      %24 = dma.hbm_to_vmem [thread:$0]  %s0, 4096, %s19, [#allocation4], 128, 128, 8
    $region5: #{tpu_custom_call.1} parent=1 // pred_fallthru
      _
    // Predicated region
    $region6: #{tpu_custom_call.1} parent=1 // pred_check
      _
    $region7: #{tpu_custom_call.1} parent=1 // pred_check_branch
      %26 = sbr.rel (0) target = $region9
    $region8: #{tpu_custom_call.1} parent=1 // pred_region
      %s28 = ssub.s32 2048, 2048
      %29 = vsyncadd [#allocation7], %s28
      %s30 = sshll.u32 [#allocation6], 4
      %s31 = int_to_ptr.vmem [resolvable:$true] %s30
      %36 = dma.hbm_to_vmem [thread:$0]  %s1, 2048, %s31, [#allocation7], 128, 128, 8
    $region9: #{tpu_custom_call.1} parent=1 // pred_fallthru
      _
    // Predicated region
    $region10: #{tpu_custom_call.1} parent=1 // pred_check
      _
    $region11: #{tpu_custom_call.1} parent=1 // pred_check_branch
      %38 = sbr.rel (0) target = $region13
    $region12: #{tpu_custom_call.1} parent=1 // pred_region
      _
    $region13: #{tpu_custom_call.1} parent=1 // pred_fallthru
      _
    // Predicated region
    $region14: #{tpu_custom_call.1} parent=1 // pred_check
      _
    $region15: #{tpu_custom_call.1} parent=1 // pred_check_branch
      %40 = sbr.rel (0) target = $region17
    $region16: #{tpu_custom_call.1} parent=1 // pred_region
      %s42 = ssub.s32 2048, 2048
      %43 = vsyncadd [#allocation7], %s42
      %s44 = sshll.u32 [#allocation8], 4
      %s45 = int_to_ptr.vmem [resolvable:$true] %s44
      %50 = dma.hbm_to_vmem [thread:$0]  %s3, 2048, %s45, [#allocation7], 128, 128, 8
    $region17: #{tpu_custom_call.1} parent=1 // pred_fallthru
      _
    // Predicated region
    $region18: #{tpu_custom_call.1} parent=1 // pred_check
      _
    $region19: #{tpu_custom_call.1} parent=1 // pred_check_branch
      %52 = sbr.rel (0) target = $region21
    $region20: #{tpu_custom_call.1} parent=1 // pred_region
      _
    $region21: #{tpu_custom_call.1} parent=1 // pred_fallthru
      _
    // Predicated region
    $region22: #{tpu_custom_call.1} parent=1 // pred_check
      _
    $region23: #{tpu_custom_call.1} parent=1 // pred_check_branch
      %54 = sbr.rel (0) target = $region25
    $region24: #{tpu_custom_call.1} parent=1 // pred_region
      %55 = dma.done [#allocation4], 4096
    $region25: #{tpu_custom_call.1} parent=1 // pred_fallthru
      _
    // Predicated region
    $region26: #{tpu_custom_call.1} parent=1 // pred_check
      _
    $region27: #{tpu_custom_call.1} parent=1 // pred_check_branch
      %57 = sbr.rel (0) target = $region29
    $region28: #{tpu_custom_call.1} parent=1 // pred_region
      %58 = dma.done [#allocation7], 2048
    $region29: #{tpu_custom_call.1} parent=1 // pred_fallthru
      _
    // Predicated region
    $region30: #{tpu_custom_call.1} parent=1 // pred_check
      _
    $region31: #{tpu_custom_call.1} parent=1 // pred_check_branch
      %60 = sbr.rel (0) target = $region33
    $region32: #{tpu_custom_call.1} parent=1 // pred_region
      %61 = dma.done [#allocation7], 2048
    $region33: #{tpu_custom_call.1} parent=1 // pred_fallthru
      _
    %p62 = scmp.eq.s32.totalorder 0, 0
    // Predicated region
    $region34: #{tpu_custom_call.1} parent=1 // pred_check
      %p63 = pneg %p62
    $region35: #{tpu_custom_call.1} parent=1 // pred_check_branch
      %65 = sbr.rel (%p63) target = $region37
    $region36: #{tpu_custom_call.1} parent=1 // pred_region
      %66 = vst [vmem:[#allocation2] sm:$0xff] 0.0
      %67 = vst [vmem:[#allocation2 + $0x8] sm:$0xff] 0.0
      %68 = vst [vmem:[#allocation2 + $0x10] sm:$0xff] 0.0
      %69 = vst [vmem:[#allocation2 + $0x18] sm:$0xff] 0.0
      %70 = vst [vmem:[#allocation2 + $0x20] sm:$0xff] 0.0
      %71 = vst [vmem:[#allocation2 + $0x28] sm:$0xff] 0.0
      %72 = vst [vmem:[#allocation2 + $0x30] sm:$0xff] 0.0
      %73 = vst [vmem:[#allocation2 + $0x38] sm:$0xff] 0.0
      %74 = vst [vmem:[#allocation2 + $0x40] sm:$0xff] 0.0
      %75 = vst [vmem:[#allocation2 + $0x48] sm:$0xff] 0.0
      %76 = vst [vmem:[#allocation2 + $0x50] sm:$0xff] 0.0
      %77 = vst [vmem:[#allocation2 + $0x58] sm:$0xff] 0.0
      %78 = vst [vmem:[#allocation2 + $0x60] sm:$0xff] 0.0
      %79 = vst [vmem:[#allocation2 + $0x68] sm:$0xff] 0.0
      %80 = vst [vmem:[#allocation2 + $0x70] sm:$0xff] 0.0
      %81 = vst [vmem:[#allocation2 + $0x78] sm:$0xff] 0.0
      %82 = vst [vmem:[#allocation2 + $0x80] sm:$0xff] 0.0
      %83 = vst [vmem:[#allocation2 + $0x88] sm:$0xff] 0.0
      %84 = vst [vmem:[#allocation2 + $0x90] sm:$0xff] 0.0
      %85 = vst [vmem:[#allocation2 + $0x98] sm:$0xff] 0.0
      %86 = vst [vmem:[#allocation2 + $0xa0] sm:$0xff] 0.0
      %87 = vst [vmem:[#allocation2 + $0xa8] sm:$0xff] 0.0
      %88 = vst [vmem:[#allocation2 + $0xb0] sm:$0xff] 0.0
      %89 = vst [vmem:[#allocation2 + $0xb8] sm:$0xff] 0.0
      %90 = vst [vmem:[#allocation2 + $0xc0] sm:$0xff] 0.0
      %91 = vst [vmem:[#allocation2 + $0xc8] sm:$0xff] 0.0
      %92 = vst [vmem:[#allocation2 + $0xd0] sm:$0xff] 0.0
      %93 = vst [vmem:[#allocation2 + $0xd8] sm:$0xff] 0.0
      %94 = vst [vmem:[#allocation2 + $0xe0] sm:$0xff] 0.0
      %95 = vst [vmem:[#allocation2 + $0xe8] sm:$0xff] 0.0
      %96 = vst [vmem:[#allocation2 + $0xf0] sm:$0xff] 0.0
      %97 = vst [vmem:[#allocation2 + $0xf8] sm:$0xff] 0.0
    $region37: #{tpu_custom_call.1} parent=1 // pred_fallthru
      _
    %v98 = vld [vmem:[#allocation3] sm:$0xff]
    %v99 = vld [vmem:[#allocation3 + $0x8] sm:$0xff]
    %v100 = vld [vmem:[#allocation3 + $0x10] sm:$0xff]
    %v101 = vld [vmem:[#allocation3 + $0x18] sm:$0xff]
    %v102 = vld [vmem:[#allocation3 + $0x20] sm:$0xff]
    %v103 = vld [vmem:[#allocation3 + $0x28] sm:$0xff]
    %v104 = vld [vmem:[#allocation3 + $0x30] sm:$0xff]
    %v105 = vld [vmem:[#allocation3 + $0x38] sm:$0xff]
    %v106 = vld [vmem:[#allocation3 + $0x40] sm:$0xff]
    %v107 = vld [vmem:[#allocation3 + $0x48] sm:$0xff]
    %v108 = vld [vmem:[#allocation3 + $0x50] sm:$0xff]
    %v109 = vld [vmem:[#allocation3 + $0x58] sm:$0xff]
    %v110 = vld [vmem:[#allocation3 + $0x60] sm:$0xff]
    %v111 = vld [vmem:[#allocation3 + $0x68] sm:$0xff]
    %v112 = vld [vmem:[#allocation3 + $0x70] sm:$0xff]
    %v113 = vld [vmem:[#allocation3 + $0x78] sm:$0xff]
    %v114 = vld [vmem:[#allocation3 + $0x80] sm:$0xff]
    %v115 = vld [vmem:[#allocation3 + $0x88] sm:$0xff]
    %v116 = vld [vmem:[#allocation3 + $0x90] sm:$0xff]
    %v117 = vld [vmem:[#allocation3 + $0x98] sm:$0xff]
    %v118 = vld [vmem:[#allocation3 + $0xa0] sm:$0xff]
    %v119 = vld [vmem:[#allocation3 + $0xa8] sm:$0xff]
    %v120 = vld [vmem:[#allocation3 + $0xb0] sm:$0xff]
    %v121 = vld [vmem:[#allocation3 + $0xb8] sm:$0xff]
    %v122 = vld [vmem:[#allocation3 + $0xc0] sm:$0xff]
    %v123 = vld [vmem:[#allocation3 + $0xc8] sm:$0xff]
    %v124 = vld [vmem:[#allocation3 + $0xd0] sm:$0xff]
    %v125 = vld [vmem:[#allocation3 + $0xd8] sm:$0xff]
    %v126 = vld [vmem:[#allocation3 + $0xe0] sm:$0xff]
    %v127 = vld [vmem:[#allocation3 + $0xe8] sm:$0xff]
    %v128 = vld [vmem:[#allocation3 + $0xf0] sm:$0xff]
    %v129 = vld [vmem:[#allocation3 + $0xf8] sm:$0xff]
    %v130 = vld [vmem:[#allocation6] sm:$0xff]
    %v131 = vld [vmem:[#allocation6 + $0x8] sm:$0xff]
    %v132 = vld [vmem:[#allocation6 + $0x10] sm:$0xff]
    %v133 = vld [vmem:[#allocation6 + $0x18] sm:$0xff]
    %v134 = vld [vmem:[#allocation6 + $0x20] sm:$0xff]
    %v135 = vld [vmem:[#allocation6 + $0x28] sm:$0xff]
    %v136 = vld [vmem:[#allocation6 + $0x30] sm:$0xff]
    %v137 = vld [vmem:[#allocation6 + $0x38] sm:$0xff]
    %v138 = vld [vmem:[#allocation6 + $0x40] sm:$0xff]
    %v139 = vld [vmem:[#allocation6 + $0x48] sm:$0xff]
    %v140 = vld [vmem:[#allocation6 + $0x50] sm:$0xff]
    %v141 = vld [vmem:[#allocation6 + $0x58] sm:$0xff]
    %v142 = vld [vmem:[#allocation6 + $0x60] sm:$0xff]
    %v143 = vld [vmem:[#allocation6 + $0x68] sm:$0xff]
    %v144 = vld [vmem:[#allocation6 + $0x70] sm:$0xff]
    %v145 = vld [vmem:[#allocation6 + $0x78] sm:$0xff]
    %v146 = vld [vmem:[%s2] sm:$0x1]
    %v148 = vlaneseq
    %v149 = vshrl.u32 %v148, 7
    %v150 = vsub.s32 0, %v149
    %v151 = vrot.slane %v146, %v150
    %153 = vmatprep.subr.mxu0 0.0
    %154 = vmatpush1.msra.mxu0 %v130
    %155 = vmatprep.subr.mxu0 0.0
    %156 = vmatpush1.msra.mxu0 %v131
    %157 = vmatprep.subr.mxu0 0.0
    %158 = vmatpush1.msra.mxu0 %v132
    %159 = vmatprep.subr.mxu0 0.0
    %160 = vmatpush1.msra.mxu0 %v133
    %161 = vmatprep.subr.mxu0 0.0
    %162 = vmatpush1.msra.mxu0 %v134
    %163 = vmatprep.subr.mxu0 0.0
    %164 = vmatpush1.msra.mxu0 %v135
    %165 = vmatprep.subr.mxu0 0.0
    %166 = vmatpush1.msra.mxu0 %v136
    %167 = vmatprep.subr.mxu0 0.0
    %168 = vmatpush1.msra.mxu0 %v137
    %169 = vmatprep.subr.mxu0 0.0
    %170 = vmatpush1.msra.mxu0 %v138
    %171 = vmatprep.subr.mxu0 0.0
    %172 = vmatpush1.msra.mxu0 %v139
    %173 = vmatprep.subr.mxu0 0.0
    %174 = vmatpush1.msra.mxu0 %v140
    %175 = vmatprep.subr.mxu0 0.0
    %176 = vmatpush1.msra.mxu0 %v141
    %177 = vmatprep.subr.mxu0 0.0
    %178 = vmatpush1.msra.mxu0 %v142
    %179 = vmatprep.subr.mxu0 0.0
    %180 = vmatpush1.msra.mxu0 %v143
    %181 = vmatprep.subr.mxu0 0.0
    %182 = vmatpush1.msra.mxu0 %v144
    %183 = vmatprep.subr.mxu0 0.0
    %184 = vmatpush1.msra.mxu0 %v145
    %185 = vmatprep.subr.mxu0 0.0
    %186 = vmatpush1.msra.mxu0 0.0
    %187 = vmatprep.subr.mxu0 0.0
    %188 = vmatpush1.msra.mxu0 0.0
    %189 = vmatprep.subr.mxu0 0.0
    %190 = vmatpush1.msra.mxu0 0.0
    %191 = vmatprep.subr.mxu0 0.0
    %192 = vmatpush1.msra.mxu0 0.0
    %193 = vmatprep.subr.mxu0 0.0
    %194 = vmatpush1.msra.mxu0 0.0
    %195 = vmatprep.subr.mxu0 0.0
    %196 = vmatpush1.msra.mxu0 0.0
    %197 = vmatprep.subr.mxu0 0.0
    %198 = vmatpush1.msra.mxu0 0.0
    %199 = vmatprep.subr.mxu0 0.0
    %200 = vmatpush1.msra.mxu0 0.0
    %201 = vmatprep.subr.mxu0 0.0
    %202 = vmatpush1.msra.mxu0 0.0
    %203 = vmatprep.subr.mxu0 0.0
    %204 = vmatpush1.msra.mxu0 0.0
    %205 = vmatprep.subr.mxu0 0.0
    %206 = vmatpush1.msra.mxu0 0.0
    %207 = vmatprep.subr.mxu0 0.0
    %208 = vmatpush1.msra.mxu0 0.0
    %209 = vmatprep.subr.mxu0 0.0
    %210 = vmatpush1.msra.mxu0 0.0
    %211 = vmatprep.subr.mxu0 0.0
    %212 = vmatpush1.msra.mxu0 0.0
    %213 = vmatprep.subr.mxu0 0.0
    %214 = vmatpush1.msra.mxu0 0.0
    %215 = vmatprep.subr.mxu0 0.0
    %216 = vmatpush1.msra.mxu0 0.0
    %217 = vmatprep.mubr.f32.mxu0 0.0
    %218 = vmatmul.mubr.f32.gmra.mrb[0].mxu0 %v98
    %v219 = vpop.f32.mrb[0].mxu0
    %v220 = vadd.f32 %v151, %v219
    %v221 = vpop.f32.mrb[0].mxu0
    %222 = vmatprep.mubr.f32.mxu0 0.0
    %223 = vmatmul.mubr.f32.gmra.mrb[0].mxu0 %v99
    %v224 = vpop.f32.mrb[0].mxu0
    %v225 = vadd.f32 %v151, %v224
    %v226 = vpop.f32.mrb[0].mxu0
    %227 = vmatprep.mubr.f32.mxu0 0.0
    %228 = vmatmul.mubr.f32.gmra.mrb[0].mxu0 %v100
    %v229 = vpop.f32.mrb[0].mxu0
    %v230 = vadd.f32 %v151, %v229
    %v231 = vpop.f32.mrb[0].mxu0
    %232 = vmatprep.mubr.f32.mxu0 0.0
    %233 = vmatmul.mubr.f32.gmra.mrb[0].mxu0 %v101
    %v234 = vpop.f32.mrb[0].mxu0
    %v235 = vadd.f32 %v151, %v234
    %v236 = vpop.f32.mrb[0].mxu0
    %237 = vmatprep.mubr.f32.mxu0 0.0
    %238 = vmatmul.mubr.f32.gmra.mrb[0].mxu0 %v102
    %v239 = vpop.f32.mrb[0].mxu0
    %v240 = vadd.f32 %v151, %v239
    %v241 = vpop.f32.mrb[0].mxu0
    %242 = vmatprep.mubr.f32.mxu0 0.0
    %243 = vmatmul.mubr.f32.gmra.mrb[0].mxu0 %v103
    %v244 = vpop.f32.mrb[0].mxu0
    %v245 = vadd.f32 %v151, %v244
    %v246 = vpop.f32.mrb[0].mxu0
    %247 = vmatprep.mubr.f32.mxu0 0.0
    %248 = vmatmul.mubr.f32.gmra.mrb[0].mxu0 %v104
    %v249 = vpop.f32.mrb[0].mxu0
    %v250 = vadd.f32 %v151, %v249
    %v251 = vpop.f32.mrb[0].mxu0
    %252 = vmatprep.mubr.f32.mxu0 0.0
    %253 = vmatmul.mubr.f32.gmra.mrb[0].mxu0 %v105
    %v254 = vpop.f32.mrb[0].mxu0
    %v255 = vadd.f32 %v151, %v254
    %v256 = vpop.f32.mrb[0].mxu0
    %257 = vmatprep.mubr.f32.mxu0 0.0
    %258 = vmatmul.mubr.f32.gmra.mrb[0].mxu0 %v106
    %v259 = vpop.f32.mrb[0].mxu0
    %v260 = vadd.f32 %v151, %v259
    %v261 = vpop.f32.mrb[0].mxu0
    %262 = vmatprep.mubr.f32.mxu0 0.0
    %263 = vmatmul.mubr.f32.gmra.mrb[0].mxu0 %v107
    %v264 = vpop.f32.mrb[0].mxu0
    %v265 = vadd.f32 %v151, %v264
    %v266 = vpop.f32.mrb[0].mxu0
    %267 = vmatprep.mubr.f32.mxu0 0.0
    %268 = vmatmul.mubr.f32.gmra.mrb[0].mxu0 %v108
    %v269 = vpop.f32.mrb[0].mxu0
    %v270 = vadd.f32 %v151, %v269
    %v271 = vpop.f32.mrb[0].mxu0
    %272 = vmatprep.mubr.f32.mxu0 0.0
    %273 = vmatmul.mubr.f32.gmra.mrb[0].mxu0 %v109
    %v274 = vpop.f32.mrb[0].mxu0
    %v275 = vadd.f32 %v151, %v274
    %v276 = vpop.f32.mrb[0].mxu0
    %277 = vmatprep.mubr.f32.mxu0 0.0
    %278 = vmatmul.mubr.f32.gmra.mrb[0].mxu0 %v110
    %v279 = vpop.f32.mrb[0].mxu0
    %v280 = vadd.f32 %v151, %v279
    %v281 = vpop.f32.mrb[0].mxu0
    %282 = vmatprep.mubr.f32.mxu0 0.0
    %283 = vmatmul.mubr.f32.gmra.mrb[0].mxu0 %v111
    %v284 = vpop.f32.mrb[0].mxu0
    %v285 = vadd.f32 %v151, %v284
    %v286 = vpop.f32.mrb[0].mxu0
    %287 = vmatprep.mubr.f32.mxu0 0.0
    %288 = vmatmul.mubr.f32.gmra.mrb[0].mxu0 %v112
    %v289 = vpop.f32.mrb[0].mxu0
    %v290 = vadd.f32 %v151, %v289
    %v291 = vpop.f32.mrb[0].mxu0
    %292 = vmatprep.mubr.f32.mxu0 0.0
    %293 = vmatmul.mubr.f32.gmra.mrb[0].mxu0 %v113
    %v294 = vpop.f32.mrb[0].mxu0
    %v295 = vadd.f32 %v151, %v294
    %v296 = vpop.f32.mrb[0].mxu0
    %297 = vmatprep.mubr.f32.mxu0 0.0
    %298 = vmatmul.mubr.f32.gmra.mrb[0].mxu0 %v114
    %v299 = vpop.f32.mrb[0].mxu0
    %v300 = vadd.f32 %v151, %v299
    %v301 = vpop.f32.mrb[0].mxu0
    %302 = vmatprep.mubr.f32.mxu0 0.0
    %303 = vmatmul.mubr.f32.gmra.mrb[0].mxu0 %v115
    %v304 = vpop.f32.mrb[0].mxu0
    %v305 = vadd.f32 %v151, %v304
    %v306 = vpop.f32.mrb[0].mxu0
    %307 = vmatprep.mubr.f32.mxu0 0.0
    %308 = vmatmul.mubr.f32.gmra.mrb[0].mxu0 %v116
    %v309 = vpop.f32.mrb[0].mxu0
    %v310 = vadd.f32 %v151, %v309
    %v311 = vpop.f32.mrb[0].mxu0
    %312 = vmatprep.mubr.f32.mxu0 0.0
    %313 = vmatmul.mubr.f32.gmra.mrb[0].mxu0 %v117
    %v314 = vpop.f32.mrb[0].mxu0
    %v315 = vadd.f32 %v151, %v314
    %v316 = vpop.f32.mrb[0].mxu0
    %317 = vmatprep.mubr.f32.mxu0 0.0
    %318 = vmatmul.mubr.f32.gmra.mrb[0].mxu0 %v118
    %v319 = vpop.f32.mrb[0].mxu0
    %v320 = vadd.f32 %v151, %v319
    %v321 = vpop.f32.mrb[0].mxu0
    %322 = vmatprep.mubr.f32.mxu0 0.0
    %323 = vmatmul.mubr.f32.gmra.mrb[0].mxu0 %v119
    %v324 = vpop.f32.mrb[0].mxu0
    %v325 = vadd.f32 %v151, %v324
    %v326 = vpop.f32.mrb[0].mxu0
    %327 = vmatprep.mubr.f32.mxu0 0.0
    %328 = vmatmul.mubr.f32.gmra.mrb[0].mxu0 %v120
    %v329 = vpop.f32.mrb[0].mxu0
    %v330 = vadd.f32 %v151, %v329
    %v331 = vpop.f32.mrb[0].mxu0
    %332 = vmatprep.mubr.f32.mxu0 0.0
    %333 = vmatmul.mubr.f32.gmra.mrb[0].mxu0 %v121
    %v334 = vpop.f32.mrb[0].mxu0
    %v335 = vadd.f32 %v151, %v334
    %v336 = vpop.f32.mrb[0].mxu0
    %337 = vmatprep.mubr.f32.mxu0 0.0
    %338 = vmatmul.mubr.f32.gmra.mrb[0].mxu0 %v122
    %v339 = vpop.f32.mrb[0].mxu0
    %v340 = vadd.f32 %v151, %v339
    %v341 = vpop.f32.mrb[0].mxu0
    %342 = vmatprep.mubr.f32.mxu0 0.0
    %343 = vmatmul.mubr.f32.gmra.mrb[0].mxu0 %v123
    %v344 = vpop.f32.mrb[0].mxu0
    %v345 = vadd.f32 %v151, %v344
    %v346 = vpop.f32.mrb[0].mxu0
    %347 = vmatprep.mubr.f32.mxu0 0.0
    %348 = vmatmul.mubr.f32.gmra.mrb[0].mxu0 %v124
    %v349 = vpop.f32.mrb[0].mxu0
    %v350 = vadd.f32 %v151, %v349
    %v351 = vpop.f32.mrb[0].mxu0
    %352 = vmatprep.mubr.f32.mxu0 0.0
    %353 = vmatmul.mubr.f32.gmra.mrb[0].mxu0 %v125
    %v354 = vpop.f32.mrb[0].mxu0
    %v355 = vadd.f32 %v151, %v354
    %v356 = vpop.f32.mrb[0].mxu0
    %357 = vmatprep.mubr.f32.mxu0 0.0
    %358 = vmatmul.mubr.f32.gmra.mrb[0].mxu0 %v126
    %v359 = vpop.f32.mrb[0].mxu0
    %v360 = vadd.f32 %v151, %v359
    %v361 = vpop.f32.mrb[0].mxu0
    %362 = vmatprep.mubr.f32.mxu0 0.0
    %363 = vmatmul.mubr.f32.gmra.mrb[0].mxu0 %v127
    %v364 = vpop.f32.mrb[0].mxu0
    %v365 = vadd.f32 %v151, %v364
    %v366 = vpop.f32.mrb[0].mxu0
    %367 = vmatprep.mubr.f32.mxu0 0.0
    %368 = vmatmul.mubr.f32.gmra.mrb[0].mxu0 %v128
    %v369 = vpop.f32.mrb[0].mxu0
    %v370 = vadd.f32 %v151, %v369
    %v371 = vpop.f32.mrb[0].mxu0
    %372 = vmatprep.mubr.f32.mxu0 0.0
    %373 = vmatmul.mubr.f32.gmra.mrb[0].mxu0 %v129
    %v374 = vpop.f32.mrb[0].mxu0
    %v375 = vadd.f32 %v151, %v374
    %v376 = vpop.f32.mrb[0].mxu0
    %377 = vdwg.mxu0
    %v378 = vmul.f32 %v220, 0.5
    %v379 = vmul.f32 %v225, 0.5
    %v380 = vmul.f32 %v230, 0.5
    %v381 = vmul.f32 %v235, 0.5
    %v382 = vmul.f32 %v240, 0.5
    %v383 = vmul.f32 %v245, 0.5
    %v384 = vmul.f32 %v250, 0.5
    %v385 = vmul.f32 %v255, 0.5
    %v386 = vmul.f32 %v260, 0.5
    %v387 = vmul.f32 %v265, 0.5
    %v388 = vmul.f32 %v270, 0.5
    %v389 = vmul.f32 %v275, 0.5
    %v390 = vmul.f32 %v280, 0.5
    %v391 = vmul.f32 %v285, 0.5
    %v392 = vmul.f32 %v290, 0.5
    %v393 = vmul.f32 %v295, 0.5
    %v394 = vmul.f32 %v300, 0.5
    %v395 = vmul.f32 %v305, 0.5
    %v396 = vmul.f32 %v310, 0.5
    %v397 = vmul.f32 %v315, 0.5
    %v398 = vmul.f32 %v320, 0.5
    %v399 = vmul.f32 %v325, 0.5
    %v400 = vmul.f32 %v330, 0.5
    %v401 = vmul.f32 %v335, 0.5
    %v402 = vmul.f32 %v340, 0.5
    %v403 = vmul.f32 %v345, 0.5
    %v404 = vmul.f32 %v350, 0.5
    %v405 = vmul.f32 %v355, 0.5
    %v406 = vmul.f32 %v360, 0.5
    %v407 = vmul.f32 %v365, 0.5
    %v408 = vmul.f32 %v370, 0.5
    %v409 = vmul.f32 %v375, 0.5
    %v410 = vmul.f32 %v220, 0.70710677
    %v411 = vmul.f32 %v225, 0.70710677
    %v412 = vmul.f32 %v230, 0.70710677
    %v413 = vmul.f32 %v235, 0.70710677
    %v414 = vmul.f32 %v240, 0.70710677
    %v415 = vmul.f32 %v245, 0.70710677
    %v416 = vmul.f32 %v250, 0.70710677
    %v417 = vmul.f32 %v255, 0.70710677
    %v418 = vmul.f32 %v260, 0.70710677
    %v419 = vmul.f32 %v265, 0.70710677
    %v420 = vmul.f32 %v270, 0.70710677
    %v421 = vmul.f32 %v275, 0.70710677
    %v422 = vmul.f32 %v280, 0.70710677
    %v423 = vmul.f32 %v285, 0.70710677
    %v424 = vmul.f32 %v290, 0.70710677
    %v425 = vmul.f32 %v295, 0.70710677
    %v426 = vmul.f32 %v300, 0.70710677
    %v427 = vmul.f32 %v305, 0.70710677
    %v428 = vmul.f32 %v310, 0.70710677
    %v429 = vmul.f32 %v315, 0.70710677
    %v430 = vmul.f32 %v320, 0.70710677
    %v431 = vmul.f32 %v325, 0.70710677
    %v432 = vmul.f32 %v330, 0.70710677
    %v433 = vmul.f32 %v335, 0.70710677
    %v434 = vmul.f32 %v340, 0.70710677
    %v435 = vmul.f32 %v345, 0.70710677
    %v436 = vmul.f32 %v350, 0.70710677
    %v437 = vmul.f32 %v355, 0.70710677
    %v438 = vmul.f32 %v360, 0.70710677
    %v439 = vmul.f32 %v365, 0.70710677
    %v440 = vmul.f32 %v370, 0.70710677
    %v441 = vmul.f32 %v375, 0.70710677
    %v442 = verf.f32.pop %v410
    %v443 = verf.f32.pop %v411
    %v444 = verf.f32.pop %v412
    %v445 = verf.f32.pop %v413
    %v446 = verf.f32.pop %v414
    %v447 = verf.f32.pop %v415
    %v448 = verf.f32.pop %v416
    %v449 = verf.f32.pop %v417
    %v450 = verf.f32.pop %v418
    %v451 = verf.f32.pop %v419
    %v452 = verf.f32.pop %v420
    %v453 = verf.f32.pop %v421
    %v454 = verf.f32.pop %v422
    %v455 = verf.f32.pop %v423
    %v456 = verf.f32.pop %v424
    %v457 = verf.f32.pop %v425
    %v458 = verf.f32.pop %v426
    %v459 = verf.f32.pop %v427
    %v460 = verf.f32.pop %v428
    %v461 = verf.f32.pop %v429
    %v462 = verf.f32.pop %v430
    %v463 = verf.f32.pop %v431
    %v464 = verf.f32.pop %v432
    %v465 = verf.f32.pop %v433
    %v466 = verf.f32.pop %v434
    %v467 = verf.f32.pop %v435
    %v468 = verf.f32.pop %v436
    %v469 = verf.f32.pop %v437
    %v470 = verf.f32.pop %v438
    %v471 = verf.f32.pop %v439
    %v472 = verf.f32.pop %v440
    %v473 = verf.f32.pop %v441
    %v474 = vadd.f32 %v442, 1.0
    %v475 = vadd.f32 %v443, 1.0
    %v476 = vadd.f32 %v444, 1.0
    %v477 = vadd.f32 %v445, 1.0
    %v478 = vadd.f32 %v446, 1.0
    %v479 = vadd.f32 %v447, 1.0
    %v480 = vadd.f32 %v448, 1.0
    %v481 = vadd.f32 %v449, 1.0
    %v482 = vadd.f32 %v450, 1.0
    %v483 = vadd.f32 %v451, 1.0
    %v484 = vadd.f32 %v452, 1.0
    %v485 = vadd.f32 %v453, 1.0
    %v486 = vadd.f32 %v454, 1.0
    %v487 = vadd.f32 %v455, 1.0
    %v488 = vadd.f32 %v456, 1.0
    %v489 = vadd.f32 %v457, 1.0
    %v490 = vadd.f32 %v458, 1.0
    %v491 = vadd.f32 %v459, 1.0
    %v492 = vadd.f32 %v460, 1.0
    %v493 = vadd.f32 %v461, 1.0
    %v494 = vadd.f32 %v462, 1.0
    %v495 = vadd.f32 %v463, 1.0
    %v496 = vadd.f32 %v464, 1.0
    %v497 = vadd.f32 %v465, 1.0
    %v498 = vadd.f32 %v466, 1.0
    %v499 = vadd.f32 %v467, 1.0
    %v500 = vadd.f32 %v468, 1.0
    %v501 = vadd.f32 %v469, 1.0
    %v502 = vadd.f32 %v470, 1.0
    %v503 = vadd.f32 %v471, 1.0
    %v504 = vadd.f32 %v472, 1.0
    %v505 = vadd.f32 %v473, 1.0
    %v506 = vmul.f32 %v378, %v474
    %v507 = vmul.f32 %v379, %v475
    %v508 = vmul.f32 %v380, %v476
    %v509 = vmul.f32 %v381, %v477
    %v510 = vmul.f32 %v382, %v478
    %v511 = vmul.f32 %v383, %v479
    %v512 = vmul.f32 %v384, %v480
    %v513 = vmul.f32 %v385, %v481
    %v514 = vmul.f32 %v386, %v482
    %v515 = vmul.f32 %v387, %v483
    %v516 = vmul.f32 %v388, %v484
    %v517 = vmul.f32 %v389, %v485
    %v518 = vmul.f32 %v390, %v486
    %v519 = vmul.f32 %v391, %v487
    %v520 = vmul.f32 %v392, %v488
    %v521 = vmul.f32 %v393, %v489
    %v522 = vmul.f32 %v394, %v490
    %v523 = vmul.f32 %v395, %v491
    %v524 = vmul.f32 %v396, %v492
    %v525 = vmul.f32 %v397, %v493
    %v526 = vmul.f32 %v398, %v494
    %v527 = vmul.f32 %v399, %v495
    %v528 = vmul.f32 %v400, %v496
    %v529 = vmul.f32 %v401, %v497
    %v530 = vmul.f32 %v402, %v498
    %v531 = vmul.f32 %v403, %v499
    %v532 = vmul.f32 %v404, %v500
    %v533 = vmul.f32 %v405, %v501
    %v534 = vmul.f32 %v406, %v502
    %v535 = vmul.f32 %v407, %v503
    %v536 = vmul.f32 %v408, %v504
    %v537 = vmul.f32 %v409, %v505
    %v538 = vld [vmem:[#allocation2] sm:$0xff]
    %v539 = vld [vmem:[#allocation2 + $0x8] sm:$0xff]
    %v540 = vld [vmem:[#allocation2 + $0x10] sm:$0xff]
    %v541 = vld [vmem:[#allocation2 + $0x18] sm:$0xff]
    %v542 = vld [vmem:[#allocation2 + $0x20] sm:$0xff]
    %v543 = vld [vmem:[#allocation2 + $0x28] sm:$0xff]
    %v544 = vld [vmem:[#allocation2 + $0x30] sm:$0xff]
    %v545 = vld [vmem:[#allocation2 + $0x38] sm:$0xff]
    %v546 = vld [vmem:[#allocation2 + $0x40] sm:$0xff]
    %v547 = vld [vmem:[#allocation2 + $0x48] sm:$0xff]
    %v548 = vld [vmem:[#allocation2 + $0x50] sm:$0xff]
    %v549 = vld [vmem:[#allocation2 + $0x58] sm:$0xff]
    %v550 = vld [vmem:[#allocation2 + $0x60] sm:$0xff]
    %v551 = vld [vmem:[#allocation2 + $0x68] sm:$0xff]
    %v552 = vld [vmem:[#allocation2 + $0x70] sm:$0xff]
    %v553 = vld [vmem:[#allocation2 + $0x78] sm:$0xff]
    %v554 = vld [vmem:[#allocation2 + $0x80] sm:$0xff]
    %v555 = vld [vmem:[#allocation2 + $0x88] sm:$0xff]
    %v556 = vld [vmem:[#allocation2 + $0x90] sm:$0xff]
    %v557 = vld [vmem:[#allocation2 + $0x98] sm:$0xff]
    %v558 = vld [vmem:[#allocation2 + $0xa0] sm:$0xff]
    %v559 = vld [vmem:[#allocation2 + $0xa8] sm:$0xff]
    %v560 = vld [vmem:[#allocation2 + $0xb0] sm:$0xff]
    %v561 = vld [vmem:[#allocation2 + $0xb8] sm:$0xff]
    %v562 = vld [vmem:[#allocation2 + $0xc0] sm:$0xff]
    %v563 = vld [vmem:[#allocation2 + $0xc8] sm:$0xff]
    %v564 = vld [vmem:[#allocation2 + $0xd0] sm:$0xff]
    %v565 = vld [vmem:[#allocation2 + $0xd8] sm:$0xff]
    %v566 = vld [vmem:[#allocation2 + $0xe0] sm:$0xff]
    %v567 = vld [vmem:[#allocation2 + $0xe8] sm:$0xff]
    %v568 = vld [vmem:[#allocation2 + $0xf0] sm:$0xff]
    %v569 = vld [vmem:[#allocation2 + $0xf8] sm:$0xff]
    %v570 = vld [vmem:[#allocation8] sm:$0xff]
    %v571 = vld [vmem:[#allocation8 + $0x8] sm:$0xff]
    %v572 = vld [vmem:[#allocation8 + $0x10] sm:$0xff]
    %v573 = vld [vmem:[#allocation8 + $0x18] sm:$0xff]
    %v574 = vld [vmem:[#allocation8 + $0x20] sm:$0xff]
    %v575 = vld [vmem:[#allocation8 + $0x28] sm:$0xff]
    %v576 = vld [vmem:[#allocation8 + $0x30] sm:$0xff]
    %v577 = vld [vmem:[#allocation8 + $0x38] sm:$0xff]
    %v578 = vld [vmem:[#allocation8 + $0x40] sm:$0xff]
    %v579 = vld [vmem:[#allocation8 + $0x48] sm:$0xff]
    %v580 = vld [vmem:[#allocation8 + $0x50] sm:$0xff]
    %v581 = vld [vmem:[#allocation8 + $0x58] sm:$0xff]
    %v582 = vld [vmem:[#allocation8 + $0x60] sm:$0xff]
    %v583 = vld [vmem:[#allocation8 + $0x68] sm:$0xff]
    %v584 = vld [vmem:[#allocation8 + $0x70] sm:$0xff]
    %v585 = vld [vmem:[#allocation8 + $0x78] sm:$0xff]
    %586 = vmatprep.subr.mxu0 0.0
    %587 = vmatpush1.msra.mxu0 %v570
    %588 = vmatprep.subr.mxu0 0.0
    %589 = vmatpush1.msra.mxu0 %v571
    %590 = vmatprep.subr.mxu0 0.0
    %591 = vmatpush1.msra.mxu0 %v572
    %592 = vmatprep.subr.mxu0 0.0
    %593 = vmatpush1.msra.mxu0 %v573
    %594 = vmatprep.subr.mxu0 0.0
    %595 = vmatpush1.msra.mxu0 %v574
    %596 = vmatprep.subr.mxu0 0.0
    %597 = vmatpush1.msra.mxu0 %v575
    %598 = vmatprep.subr.mxu0 0.0
    %599 = vmatpush1.msra.mxu0 %v576
    %600 = vmatprep.subr.mxu0 0.0
    %601 = vmatpush1.msra.mxu0 %v577
    %602 = vmatprep.subr.mxu0 0.0
    %603 = vmatpush1.msra.mxu0 %v578
    %604 = vmatprep.subr.mxu0 0.0
    %605 = vmatpush1.msra.mxu0 %v579
    %606 = vmatprep.subr.mxu0 0.0
    %607 = vmatpush1.msra.mxu0 %v580
    %608 = vmatprep.subr.mxu0 0.0
    %609 = vmatpush1.msra.mxu0 %v581
    %610 = vmatprep.subr.mxu0 0.0
    %611 = vmatpush1.msra.mxu0 %v582
    %612 = vmatprep.subr.mxu0 0.0
    %613 = vmatpush1.msra.mxu0 %v583
    %614 = vmatprep.subr.mxu0 0.0
    %615 = vmatpush1.msra.mxu0 %v584
    %616 = vmatprep.subr.mxu0 0.0
    %617 = vmatpush1.msra.mxu0 %v585
    %618 = vmatprep.subr.mxu0 0.0
    %619 = vmatpush1.msra.mxu0 0.0
    %620 = vmatprep.subr.mxu0 0.0
    %621 = vmatpush1.msra.mxu0 0.0
    %622 = vmatprep.subr.mxu0 0.0
    %623 = vmatpush1.msra.mxu0 0.0
    %624 = vmatprep.subr.mxu0 0.0
    %625 = vmatpush1.msra.mxu0 0.0
    %626 = vmatprep.subr.mxu0 0.0
    %627 = vmatpush1.msra.mxu0 0.0
    %628 = vmatprep.subr.mxu0 0.0
    %629 = vmatpush1.msra.mxu0 0.0
    %630 = vmatprep.subr.mxu0 0.0
    %631 = vmatpush1.msra.mxu0 0.0
    %632 = vmatprep.subr.mxu0 0.0
    %633 = vmatpush1.msra.mxu0 0.0
    %634 = vmatprep.subr.mxu0 0.0
    %635 = vmatpush1.msra.mxu0 0.0
    %636 = vmatprep.subr.mxu0 0.0
    %637 = vmatpush1.msra.mxu0 0.0
    %638 = vmatprep.subr.mxu0 0.0
    %639 = vmatpush1.msra.mxu0 0.0
    %640 = vmatprep.subr.mxu0 0.0
    %641 = vmatpush1.msra.mxu0 0.0
    %642 = vmatprep.subr.mxu0 0.0
    %643 = vmatpush1.msra.mxu0 0.0
    %644 = vmatprep.subr.mxu0 0.0
    %645 = vmatpush1.msra.mxu0 0.0
    %646 = vmatprep.subr.mxu0 0.0
    %647 = vmatpush1.msra.mxu0 0.0
    %648 = vmatprep.subr.mxu0 0.0
    %649 = vmatpush1.msra.mxu0 0.0
    %650 = vmatprep.mubr.f32.mxu0 0.0
    %651 = vmatmul.mubr.f32.gmra.mrb[0].mxu0 %v506
    %v652 = vpop.f32.mrb[0].mxu0
    %v653 = vadd.f32 0.0, %v652
    %v654 = vpop.f32.mrb[0].mxu0
    %655 = vmatprep.mubr.f32.mxu0 0.0
    %656 = vmatmul.mubr.f32.gmra.mrb[0].mxu0 %v507
    %v657 = vpop.f32.mrb[0].mxu0
    %v658 = vadd.f32 0.0, %v657
    %v659 = vpop.f32.mrb[0].mxu0
    %660 = vmatprep.mubr.f32.mxu0 0.0
    %661 = vmatmul.mubr.f32.gmra.mrb[0].mxu0 %v508
    %v662 = vpop.f32.mrb[0].mxu0
    %v663 = vadd.f32 0.0, %v662
    %v664 = vpop.f32.mrb[0].mxu0
    %665 = vmatprep.mubr.f32.mxu0 0.0
    %666 = vmatmul.mubr.f32.gmra.mrb[0].mxu0 %v509
    %v667 = vpop.f32.mrb[0].mxu0
    %v668 = vadd.f32 0.0, %v667
    %v669 = vpop.f32.mrb[0].mxu0
    %670 = vmatprep.mubr.f32.mxu0 0.0
    %671 = vmatmul.mubr.f32.gmra.mrb[0].mxu0 %v510
    %v672 = vpop.f32.mrb[0].mxu0
    %v673 = vadd.f32 0.0, %v672
    %v674 = vpop.f32.mrb[0].mxu0
    %675 = vmatprep.mubr.f32.mxu0 0.0
    %676 = vmatmul.mubr.f32.gmra.mrb[0].mxu0 %v511
    %v677 = vpop.f32.mrb[0].mxu0
    %v678 = vadd.f32 0.0, %v677
    %v679 = vpop.f32.mrb[0].mxu0
    %680 = vmatprep.mubr.f32.mxu0 0.0
    %681 = vmatmul.mubr.f32.gmra.mrb[0].mxu0 %v512
    %v682 = vpop.f32.mrb[0].mxu0
    %v683 = vadd.f32 0.0, %v682
    %v684 = vpop.f32.mrb[0].mxu0
    %685 = vmatprep.mubr.f32.mxu0 0.0
    %686 = vmatmul.mubr.f32.gmra.mrb[0].mxu0 %v513
    %v687 = vpop.f32.mrb[0].mxu0
    %v688 = vadd.f32 0.0, %v687
    %v689 = vpop.f32.mrb[0].mxu0
    %690 = vmatprep.mubr.f32.mxu0 0.0
    %691 = vmatmul.mubr.f32.gmra.mrb[0].mxu0 %v514
    %v692 = vpop.f32.mrb[0].mxu0
    %v693 = vadd.f32 0.0, %v692
    %v694 = vpop.f32.mrb[0].mxu0
    %695 = vmatprep.mubr.f32.mxu0 0.0
    %696 = vmatmul.mubr.f32.gmra.mrb[0].mxu0 %v515
    %v697 = vpop.f32.mrb[0].mxu0
    %v698 = vadd.f32 0.0, %v697
    %v699 = vpop.f32.mrb[0].mxu0
    %700 = vmatprep.mubr.f32.mxu0 0.0
    %701 = vmatmul.mubr.f32.gmra.mrb[0].mxu0 %v516
    %v702 = vpop.f32.mrb[0].mxu0
    %v703 = vadd.f32 0.0, %v702
    %v704 = vpop.f32.mrb[0].mxu0
    %705 = vmatprep.mubr.f32.mxu0 0.0
    %706 = vmatmul.mubr.f32.gmra.mrb[0].mxu0 %v517
    %v707 = vpop.f32.mrb[0].mxu0
    %v708 = vadd.f32 0.0, %v707
    %v709 = vpop.f32.mrb[0].mxu0
    %710 = vmatprep.mubr.f32.mxu0 0.0
    %711 = vmatmul.mubr.f32.gmra.mrb[0].mxu0 %v518
    %v712 = vpop.f32.mrb[0].mxu0
    %v713 = vadd.f32 0.0, %v712
    %v714 = vpop.f32.mrb[0].mxu0
    %715 = vmatprep.mubr.f32.mxu0 0.0
    %716 = vmatmul.mubr.f32.gmra.mrb[0].mxu0 %v519
    %v717 = vpop.f32.mrb[0].mxu0
    %v718 = vadd.f32 0.0, %v717
    %v719 = vpop.f32.mrb[0].mxu0
    %720 = vmatprep.mubr.f32.mxu0 0.0
    %721 = vmatmul.mubr.f32.gmra.mrb[0].mxu0 %v520
    %v722 = vpop.f32.mrb[0].mxu0
    %v723 = vadd.f32 0.0, %v722
    %v724 = vpop.f32.mrb[0].mxu0
    %725 = vmatprep.mubr.f32.mxu0 0.0
    %726 = vmatmul.mubr.f32.gmra.mrb[0].mxu0 %v521
    %v727 = vpop.f32.mrb[0].mxu0
    %v728 = vadd.f32 0.0, %v727
    %v729 = vpop.f32.mrb[0].mxu0
    %730 = vmatprep.mubr.f32.mxu0 0.0
    %731 = vmatmul.mubr.f32.gmra.mrb[0].mxu0 %v522
    %v732 = vpop.f32.mrb[0].mxu0
    %v733 = vadd.f32 0.0, %v732
    %v734 = vpop.f32.mrb[0].mxu0
    %735 = vmatprep.mubr.f32.mxu0 0.0
    %736 = vmatmul.mubr.f32.gmra.mrb[0].mxu0 %v523
    %v737 = vpop.f32.mrb[0].mxu0
    %v738 = vadd.f32 0.0, %v737
    %v739 = vpop.f32.mrb[0].mxu0
    %740 = vmatprep.mubr.f32.mxu0 0.0
    %741 = vmatmul.mubr.f32.gmra.mrb[0].mxu0 %v524
    %v742 = vpop.f32.mrb[0].mxu0
    %v743 = vadd.f32 0.0, %v742
    %v744 = vpop.f32.mrb[0].mxu0
    %745 = vmatprep.mubr.f32.mxu0 0.0
    %746 = vmatmul.mubr.f32.gmra.mrb[0].mxu0 %v525
    %v747 = vpop.f32.mrb[0].mxu0
    %v748 = vadd.f32 0.0, %v747
    %v749 = vpop.f32.mrb[0].mxu0
    %750 = vmatprep.mubr.f32.mxu0 0.0
    %751 = vmatmul.mubr.f32.gmra.mrb[0].mxu0 %v526
    %v752 = vpop.f32.mrb[0].mxu0
    %v753 = vadd.f32 0.0, %v752
    %v754 = vpop.f32.mrb[0].mxu0
    %755 = vmatprep.mubr.f32.mxu0 0.0
    %756 = vmatmul.mubr.f32.gmra.mrb[0].mxu0 %v527
    %v757 = vpop.f32.mrb[0].mxu0
    %v758 = vadd.f32 0.0, %v757
    %v759 = vpop.f32.mrb[0].mxu0
    %760 = vmatprep.mubr.f32.mxu0 0.0
    %761 = vmatmul.mubr.f32.gmra.mrb[0].mxu0 %v528
    %v762 = vpop.f32.mrb[0].mxu0
    %v763 = vadd.f32 0.0, %v762
    %v764 = vpop.f32.mrb[0].mxu0
    %765 = vmatprep.mubr.f32.mxu0 0.0
    %766 = vmatmul.mubr.f32.gmra.mrb[0].mxu0 %v529
    %v767 = vpop.f32.mrb[0].mxu0
    %v768 = vadd.f32 0.0, %v767
    %v769 = vpop.f32.mrb[0].mxu0
    %770 = vmatprep.mubr.f32.mxu0 0.0
    %771 = vmatmul.mubr.f32.gmra.mrb[0].mxu0 %v530
    %v772 = vpop.f32.mrb[0].mxu0
    %v773 = vadd.f32 0.0, %v772
    %v774 = vpop.f32.mrb[0].mxu0
    %775 = vmatprep.mubr.f32.mxu0 0.0
    %776 = vmatmul.mubr.f32.gmra.mrb[0].mxu0 %v531
    %v777 = vpop.f32.mrb[0].mxu0
    %v778 = vadd.f32 0.0, %v777
    %v779 = vpop.f32.mrb[0].mxu0
    %780 = vmatprep.mubr.f32.mxu0 0.0
    %781 = vmatmul.mubr.f32.gmra.mrb[0].mxu0 %v532
    %v782 = vpop.f32.mrb[0].mxu0
    %v783 = vadd.f32 0.0, %v782
    %v784 = vpop.f32.mrb[0].mxu0
    %785 = vmatprep.mubr.f32.mxu0 0.0
    %786 = vmatmul.mubr.f32.gmra.mrb[0].mxu0 %v533
    %v787 = vpop.f32.mrb[0].mxu0
    %v788 = vadd.f32 0.0, %v787
    %v789 = vpop.f32.mrb[0].mxu0
    %790 = vmatprep.mubr.f32.mxu0 0.0
    %791 = vmatmul.mubr.f32.gmra.mrb[0].mxu0 %v534
    %v792 = vpop.f32.mrb[0].mxu0
    %v793 = vadd.f32 0.0, %v792
    %v794 = vpop.f32.mrb[0].mxu0
    %795 = vmatprep.mubr.f32.mxu0 0.0
    %796 = vmatmul.mubr.f32.gmra.mrb[0].mxu0 %v535
    %v797 = vpop.f32.mrb[0].mxu0
    %v798 = vadd.f32 0.0, %v797
    %v799 = vpop.f32.mrb[0].mxu0
    %800 = vmatprep.mubr.f32.mxu0 0.0
    %801 = vmatmul.mubr.f32.gmra.mrb[0].mxu0 %v536
    %v802 = vpop.f32.mrb[0].mxu0
    %v803 = vadd.f32 0.0, %v802
    %v804 = vpop.f32.mrb[0].mxu0
    %805 = vmatprep.mubr.f32.mxu0 0.0
    %806 = vmatmul.mubr.f32.gmra.mrb[0].mxu0 %v537
    %v807 = vpop.f32.mrb[0].mxu0
    %v808 = vadd.f32 0.0, %v807
    %v809 = vpop.f32.mrb[0].mxu0
    %810 = vdwg.mxu0
    %v811 = vadd.f32 %v538, %v653
    %v812 = vadd.f32 %v539, %v658
    %v813 = vadd.f32 %v540, %v663
    %v814 = vadd.f32 %v541, %v668
    %v815 = vadd.f32 %v542, %v673
    %v816 = vadd.f32 %v543, %v678
    %v817 = vadd.f32 %v544, %v683
    %v818 = vadd.f32 %v545, %v688
    %v819 = vadd.f32 %v546, %v693
    %v820 = vadd.f32 %v547, %v698
    %v821 = vadd.f32 %v548, %v703
    %v822 = vadd.f32 %v549, %v708
    %v823 = vadd.f32 %v550, %v713
    %v824 = vadd.f32 %v551, %v718
    %v825 = vadd.f32 %v552, %v723
    %v826 = vadd.f32 %v553, %v728
    %v827 = vadd.f32 %v554, %v733
    %v828 = vadd.f32 %v555, %v738
    %v829 = vadd.f32 %v556, %v743
    %v830 = vadd.f32 %v557, %v748
    %v831 = vadd.f32 %v558, %v753
    %v832 = vadd.f32 %v559, %v758
    %v833 = vadd.f32 %v560, %v763
    %v834 = vadd.f32 %v561, %v768
    %v835 = vadd.f32 %v562, %v773
    %v836 = vadd.f32 %v563, %v778
    %v837 = vadd.f32 %v564, %v783
    %v838 = vadd.f32 %v565, %v788
    %v839 = vadd.f32 %v566, %v793
    %v840 = vadd.f32 %v567, %v798
    %v841 = vadd.f32 %v568, %v803
    %v842 = vadd.f32 %v569, %v808
    %843 = vst [vmem:[#allocation2] sm:$0xff] %v811
    %844 = vst [vmem:[#allocation2 + $0x8] sm:$0xff] %v812
    %845 = vst [vmem:[#allocation2 + $0x10] sm:$0xff] %v813
    %846 = vst [vmem:[#allocation2 + $0x18] sm:$0xff] %v814
    %847 = vst [vmem:[#allocation2 + $0x20] sm:$0xff] %v815
    %848 = vst [vmem:[#allocation2 + $0x28] sm:$0xff] %v816
    %849 = vst [vmem:[#allocation2 + $0x30] sm:$0xff] %v817
    %850 = vst [vmem:[#allocation2 + $0x38] sm:$0xff] %v818
    %851 = vst [vmem:[#allocation2 + $0x40] sm:$0xff] %v819
    %852 = vst [vmem:[#allocation2 + $0x48] sm:$0xff] %v820
    %853 = vst [vmem:[#allocation2 + $0x50] sm:$0xff] %v821
    %854 = vst [vmem:[#allocation2 + $0x58] sm:$0xff] %v822
    %855 = vst [vmem:[#allocation2 + $0x60] sm:$0xff] %v823
    %856 = vst [vmem:[#allocation2 + $0x68] sm:$0xff] %v824
    %857 = vst [vmem:[#allocation2 + $0x70] sm:$0xff] %v825
    %858 = vst [vmem:[#allocation2 + $0x78] sm:$0xff] %v826
    %859 = vst [vmem:[#allocation2 + $0x80] sm:$0xff] %v827
    %860 = vst [vmem:[#allocation2 + $0x88] sm:$0xff] %v828
    %861 = vst [vmem:[#allocation2 + $0x90] sm:$0xff] %v829
    %862 = vst [vmem:[#allocation2 + $0x98] sm:$0xff] %v830
    %863 = vst [vmem:[#allocation2 + $0xa0] sm:$0xff] %v831
    %864 = vst [vmem:[#allocation2 + $0xa8] sm:$0xff] %v832
    %865 = vst [vmem:[#allocation2 + $0xb0] sm:$0xff] %v833
    %866 = vst [vmem:[#allocation2 + $0xb8] sm:$0xff] %v834
    %867 = vst [vmem:[#allocation2 + $0xc0] sm:$0xff] %v835
    %868 = vst [vmem:[#allocation2 + $0xc8] sm:$0xff] %v836
    %869 = vst [vmem:[#allocation2 + $0xd0] sm:$0xff] %v837
    %870 = vst [vmem:[#allocation2 + $0xd8] sm:$0xff] %v838
    %871 = vst [vmem:[#allocation2 + $0xe0] sm:$0xff] %v839
    %872 = vst [vmem:[#allocation2 + $0xe8] sm:$0xff] %v840
    %873 = vst [vmem:[#allocation2 + $0xf0] sm:$0xff] %v841
    %874 = vst [vmem:[#allocation2 + $0xf8] sm:$0xff] %v842
    // Predicated region
    $region38: #{tpu_custom_call.1} parent=1 // pred_check
      %p875 = pneg %p62
    $region39: #{tpu_custom_call.1} parent=1 // pred_check_branch
      %877 = sbr.rel (%p875) target = $region41
    $region40: #{tpu_custom_call.1} parent=1 // pred_region
      %v878 = vld [vmem:[#allocation2] sm:$0xff]
      %v879 = vld [vmem:[#allocation2 + $0x8] sm:$0xff]
      %v880 = vld [vmem:[#allocation2 + $0x10] sm:$0xff]
      %v881 = vld [vmem:[#allocation2 + $0x18] sm:$0xff]
      %v882 = vld [vmem:[#allocation2 + $0x20] sm:$0xff]
      %v883 = vld [vmem:[#allocation2 + $0x28] sm:$0xff]
      %v884 = vld [vmem:[#allocation2 + $0x30] sm:$0xff]
      %v885 = vld [vmem:[#allocation2 + $0x38] sm:$0xff]
      %v886 = vld [vmem:[#allocation2 + $0x40] sm:$0xff]
      %v887 = vld [vmem:[#allocation2 + $0x48] sm:$0xff]
      %v888 = vld [vmem:[#allocation2 + $0x50] sm:$0xff]
      %v889 = vld [vmem:[#allocation2 + $0x58] sm:$0xff]
      %v890 = vld [vmem:[#allocation2 + $0x60] sm:$0xff]
      %v891 = vld [vmem:[#allocation2 + $0x68] sm:$0xff]
      %v892 = vld [vmem:[#allocation2 + $0x70] sm:$0xff]
      %v893 = vld [vmem:[#allocation2 + $0x78] sm:$0xff]
      %v894 = vld [vmem:[#allocation2 + $0x80] sm:$0xff]
      %v895 = vld [vmem:[#allocation2 + $0x88] sm:$0xff]
      %v896 = vld [vmem:[#allocation2 + $0x90] sm:$0xff]
      %v897 = vld [vmem:[#allocation2 + $0x98] sm:$0xff]
      %v898 = vld [vmem:[#allocation2 + $0xa0] sm:$0xff]
      %v899 = vld [vmem:[#allocation2 + $0xa8] sm:$0xff]
      %v900 = vld [vmem:[#allocation2 + $0xb0] sm:$0xff]
      %v901 = vld [vmem:[#allocation2 + $0xb8] sm:$0xff]
      %v902 = vld [vmem:[#allocation2 + $0xc0] sm:$0xff]
      %v903 = vld [vmem:[#allocation2 + $0xc8] sm:$0xff]
      %v904 = vld [vmem:[#allocation2 + $0xd0] sm:$0xff]
      %v905 = vld [vmem:[#allocation2 + $0xd8] sm:$0xff]
      %v906 = vld [vmem:[#allocation2 + $0xe0] sm:$0xff]
      %v907 = vld [vmem:[#allocation2 + $0xe8] sm:$0xff]
      %v908 = vld [vmem:[#allocation2 + $0xf0] sm:$0xff]
      %v909 = vld [vmem:[#allocation2 + $0xf8] sm:$0xff]
      %v910 = vld [vmem:[%s4] sm:$0x1]
      %v912 = vlaneseq
      %v913 = vshrl.u32 %v912, 7
      %v914 = vsub.s32 0, %v913
      %v915 = vrot.slane %v910, %v914
      %v917 = vadd.f32 %v878, %v915
      %v918 = vadd.f32 %v879, %v915
      %v919 = vadd.f32 %v880, %v915
      %v920 = vadd.f32 %v881, %v915
      %v921 = vadd.f32 %v882, %v915
      %v922 = vadd.f32 %v883, %v915
      %v923 = vadd.f32 %v884, %v915
      %v924 = vadd.f32 %v885, %v915
      %v925 = vadd.f32 %v886, %v915
      %v926 = vadd.f32 %v887, %v915
      %v927 = vadd.f32 %v888, %v915
      %v928 = vadd.f32 %v889, %v915
      %v929 = vadd.f32 %v890, %v915
      %v930 = vadd.f32 %v891, %v915
      %v931 = vadd.f32 %v892, %v915
      %v932 = vadd.f32 %v893, %v915
      %v933 = vadd.f32 %v894, %v915
      %v934 = vadd.f32 %v895, %v915
      %v935 = vadd.f32 %v896, %v915
      %v936 = vadd.f32 %v897, %v915
      %v937 = vadd.f32 %v898, %v915
      %v938 = vadd.f32 %v899, %v915
      %v939 = vadd.f32 %v900, %v915
      %v940 = vadd.f32 %v901, %v915
      %v941 = vadd.f32 %v902, %v915
      %v942 = vadd.f32 %v903, %v915
      %v943 = vadd.f32 %v904, %v915
      %v944 = vadd.f32 %v905, %v915
      %v945 = vadd.f32 %v906, %v915
      %v946 = vadd.f32 %v907, %v915
      %v947 = vadd.f32 %v908, %v915
      %v948 = vadd.f32 %v909, %v915
      %949 = vst [vmem:[#allocation9] sm:$0xff] %v917
      %950 = vst [vmem:[#allocation9 + $0x8] sm:$0xff] %v918
      %951 = vst [vmem:[#allocation9 + $0x10] sm:$0xff] %v919
      %952 = vst [vmem:[#allocation9 + $0x18] sm:$0xff] %v920
      %953 = vst [vmem:[#allocation9 + $0x20] sm:$0xff] %v921
      %954 = vst [vmem:[#allocation9 + $0x28] sm:$0xff] %v922
      %955 = vst [vmem:[#allocation9 + $0x30] sm:$0xff] %v923
      %956 = vst [vmem:[#allocation9 + $0x38] sm:$0xff] %v924
      %957 = vst [vmem:[#allocation9 + $0x40] sm:$0xff] %v925
      %958 = vst [vmem:[#allocation9 + $0x48] sm:$0xff] %v926
      %959 = vst [vmem:[#allocation9 + $0x50] sm:$0xff] %v927
      %960 = vst [vmem:[#allocation9 + $0x58] sm:$0xff] %v928
      %961 = vst [vmem:[#allocation9 + $0x60] sm:$0xff] %v929
      %962 = vst [vmem:[#allocation9 + $0x68] sm:$0xff] %v930
      %963 = vst [vmem:[#allocation9 + $0x70] sm:$0xff] %v931
      %964 = vst [vmem:[#allocation9 + $0x78] sm:$0xff] %v932
      %965 = vst [vmem:[#allocation9 + $0x80] sm:$0xff] %v933
      %966 = vst [vmem:[#allocation9 + $0x88] sm:$0xff] %v934
      %967 = vst [vmem:[#allocation9 + $0x90] sm:$0xff] %v935
      %968 = vst [vmem:[#allocation9 + $0x98] sm:$0xff] %v936
      %969 = vst [vmem:[#allocation9 + $0xa0] sm:$0xff] %v937
      %970 = vst [vmem:[#allocation9 + $0xa8] sm:$0xff] %v938
      %971 = vst [vmem:[#allocation9 + $0xb0] sm:$0xff] %v939
      %972 = vst [vmem:[#allocation9 + $0xb8] sm:$0xff] %v940
      %973 = vst [vmem:[#allocation9 + $0xc0] sm:$0xff] %v941
      %974 = vst [vmem:[#allocation9 + $0xc8] sm:$0xff] %v942
      %975 = vst [vmem:[#allocation9 + $0xd0] sm:$0xff] %v943
      %976 = vst [vmem:[#allocation9 + $0xd8] sm:$0xff] %v944
      %977 = vst [vmem:[#allocation9 + $0xe0] sm:$0xff] %v945
      %978 = vst [vmem:[#allocation9 + $0xe8] sm:$0xff] %v946
      %979 = vst [vmem:[#allocation9 + $0xf0] sm:$0xff] %v947
      %980 = vst [vmem:[#allocation9 + $0xf8] sm:$0xff] %v948
    $region41: #{tpu_custom_call.1} parent=1 // pred_fallthru
      _
    // Predicated region
    $region42: #{tpu_custom_call.1} parent=1 // pred_check
      _
    $region43: #{tpu_custom_call.1} parent=1 // pred_check_branch
      %982 = sbr.rel (0) target = $region45
    $region44: #{tpu_custom_call.1} parent=1 // pred_region
      %s984 = ssub.s32 4096, 4096
      %985 = vsyncadd [#allocation5], %s984
      %s986 = sshll.u32 [#allocation9], 4
      %s987 = int_to_ptr.vmem [resolvable:$true] %s986
      %992 = dma.vmem_to_hbm [thread:$0]  %s987, 4096, %s5, [#allocation5], 128, 128, 8
    $region45: #{tpu_custom_call.1} parent=1 // pred_fallthru
      _
    // Predicated region
    $region46: #{tpu_custom_call.1} parent=1 // pred_check
      _
    $region47: #{tpu_custom_call.1} parent=1 // pred_check_branch
      %994 = sbr.rel (0) target = $region49
    $region48: #{tpu_custom_call.1} parent=1 // pred_region
      %995 = dma.done [#allocation5], 4096
    $region49: #{tpu_custom_call.1} parent=1 // pred_fallthru
      _
    %996 = vsyncpa [#allocation4], 1
    %997 = vsyncpa [#allocation7], 1
    %998 = vsyncpa [#allocation5], 1

</llo_original>
